<compile_context>
chip_gen: v6e
topology: v6e:2x2x1
jax: 0.10.0
libtpu: 0.0.40
codegen_flags: <defaults>
</compile_context>

<pallas_src>
import jax
import jax.numpy as jnp
from jax import lax
from jax.experimental import pallas as pl
from jax.experimental.pallas import tpu as pltpu

LANES = 128
SUBLANES = 8
CHUNK_ROWS = 512          # inner compute chunk (bounds f32 temporaries to ~256 KiB)


def _round_up(x, m):
    return ((x + m - 1) // m) * m


def _hw_config():
    """Generation-aware (ncores, input_vmem_budget, vmem_limit, dim_semantics)."""
    kind = ""
    try:
        kind = jax.devices()[0].device_kind.lower()
    except Exception:
        pass
    vmem_cap = None
    try:
        vmem_cap = int(pltpu.get_tpu_info().vmem_capacity_bytes)
    except Exception:
        pass
    # v7x: 64 MiB VMEM per TensorCore, 2 TCs/chip.  v5e / v6e: 128 MiB, 1 TC.
    is_v7 = ("v7" in kind) or (vmem_cap is not None and vmem_cap <= 64 * 1024 * 1024)
    if is_v7:
        ncores = 2
        input_budget = 36 * 1024 * 1024       # 2 inputs x 2 pipeline buffers
        vmem_limit = 48 * 1024 * 1024         # leave headroom in 64 MiB VMEM
        core_sem = getattr(pltpu, "CORE_PARALLEL", None)
        if core_sem is not None:
            sems = (core_sem, getattr(pltpu, "ARBITRARY", "arbitrary"))
        else:
            sems = ("parallel", "arbitrary")
    else:
        ncores = 1
        input_budget = 48 * 1024 * 1024       # 128 MiB parts: ~12 MiB input tiles
        vmem_limit = 64 * 1024 * 1024
        sems = ("arbitrary", "arbitrary")
    return ncores, input_budget, vmem_limit, sems


def mse_volume_loss(preds, targets, *, tm=None):
    """Mean squared error over the full volume, computed in a Pallas TPU kernel."""
    assert preds.shape == targets.shape, (preds.shape, targets.shape)
    total = preds.size
    ncores, input_budget, vmem_limit, dim_sems = _hw_config()

    itemsize = jnp.dtype(preds.dtype).itemsize
    sublane = max(SUBLANES, 32 // itemsize)   # 8 (f32), 16 (bf16), 32 (int8/fp8)

    flat_p = preds.reshape(-1)
    flat_t = targets.reshape(-1)
    rem = total % LANES
    if rem:
        # TODO(synk): this fallback still copies the inputs once; only taken
        # when the element count isn't a multiple of 128 (rare for real volumes).
        flat_p = jnp.pad(flat_p, (0, LANES - rem))
        flat_t = jnp.pad(flat_t, (0, LANES - rem))
    rows = flat_p.size // LANES               # = ceil(total / 128)
    p2 = flat_p.reshape(rows, LANES)          # free reshape (contiguous)
    t2 = flat_t.reshape(rows, LANES)

    if rows < sublane:                        # tiny input: pad up to one sublane tile
        p2 = jnp.pad(p2, ((0, sublane - rows), (0, 0)))
        t2 = jnp.pad(t2, ((0, sublane - rows), (0, 0)))
        rows = sublane                        # zero rows contribute 0 to the sum

    # Inner compute chunk (rows): a multiple of the dtype sublane multiple.
    chunk = min(CHUNK_ROWS, (rows // sublane) * sublane)
    chunk = max(chunk, sublane)

    # DMA tile rows: as large as the generation-aware VMEM budget allows
    # (2 inputs x 2 pipeline buffers), in whole chunks, never exceeding the
    # whole-chunk row count of the array (so boundary blocks stay standard).
    tm_cap = max(chunk, (input_budget // (4 * LANES * itemsize)) // chunk * chunk)
    tm_req = tm_cap if tm is None else max(chunk, (int(tm) // chunk) * chunk)
    tm_eff = min(tm_req, tm_cap, max(chunk, (rows // chunk) * chunk))
    n_chunks = tm_eff // chunk

    nblocks = pl.cdiv(rows, tm_eff)
    grid_inner = pl.cdiv(nblocks, ncores)
    # True iff some tile (ragged boundary block, or a clamped duplicate block
    # on the 2-core split) sticks out past `rows`; masked in-kernel.
    needs_mask = (ncores * grid_inner * tm_eff) != rows

    def kernel(p_ref, t_ref, o_ref):
        c = pl.program_id(0)
        i = pl.program_id(1)

        @pl.when(i == 0)
        def _():
            o_ref[...] = jnp.zeros_like(o_ref)

        if needs_mask:
            tile_row0 = (c * grid_inner + i) * tm_eff
            row_iota = lax.broadcasted_iota(jnp.int32, (chunk, LANES), 0)

        def body(j, acc):
            r0 = pl.multiple_of(j * chunk, chunk)
            d = (p_ref[pl.ds(r0, chunk), :].astype(jnp.float32)
                 - t_ref[pl.ds(r0, chunk), :].astype(jnp.float32))
            sq = d * d
            if needs_mask:
                # Mask BEFORE accumulating: boundary-block rows past `rows`
                # hold undefined VMEM data.
                sq = jnp.where(tile_row0 + r0 + row_iota < rows, sq, 0.0)
            # (chunk,128) -> (chunk//8, 8, 128) -> sum over axis 0: pure VPU adds.
            return acc + jnp.sum(sq.reshape(-1, SUBLANES, LANES), axis=0)

        acc = lax.fori_loop(0, n_chunks, body,
                            jnp.zeros((SUBLANES, LANES), jnp.float32))
        # Accumulate straight into the per-core output block (resident across
        # the inner reduction axis).
        o_ref[0] = o_ref[0] + acc

    def in_map(c, i):
        # Clamp so the (rare) trailing duplicate block of the 2-core split stays
        # in-bounds; its contribution is fully masked to zero in the kernel.
        return (jnp.minimum(c * grid_inner + i, nblocks - 1), 0)

    cost = pl.CostEstimate(
        flops=3 * rows * LANES,
        transcendentals=0,
        bytes_accessed=p2.nbytes + t2.nbytes + ncores * SUBLANES * LANES * 4,
    )

    partials = pl.pallas_call(
        kernel,
        out_shape=jax.ShapeDtypeStruct((ncores, SUBLANES, LANES), jnp.float32),
        grid_spec=pltpu.PrefetchScalarGridSpec(
            num_scalar_prefetch=0,
            grid=(ncores, grid_inner),
            in_specs=[
                pl.BlockSpec((tm_eff, LANES), in_map),
                pl.BlockSpec((tm_eff, LANES), in_map),
            ],
            out_specs=pl.BlockSpec((1, SUBLANES, LANES), lambda c, i: (c, 0, 0)),
        ),
        compiler_params=pltpu.CompilerParams(
            dimension_semantics=dim_sems,
            vmem_limit_bytes=vmem_limit,
        ),
        cost_estimate=cost,
    )(p2, t2)

    # TODO(synk): for very large volumes (>~1e9 elems/core) add a second
    # accumulation level to bound f32 rounding drift in the 1024 slots.
    return jnp.sum(partials) / jnp.float32(total)


class VolumeLoss:
    """Mirror of the PyTorch VolumeLoss module: forwards to volume_loss."""

    def __init__(self, pixel_loss=None, volume_loss=mse_volume_loss, ratio=None):
        # pixel_loss / ratio are accepted but unused, matching the reference.
        self.volume_loss = volume_loss

    def get_names(self):
        return (self.__class__.__name__, " ",
                getattr(self.volume_loss, "__name__", self.volume_loss.__class__.__name__))

    def __str__(self):
        return f"{self.__class__.__name__}:{self.volume_loss}"

    def __call__(self, preds, targets):
        return self.volume_loss(preds, targets)


if __name__ == "__main__":
    key = jax.random.PRNGKey(0)
    kp, kt, kp2, kt2 = jax.random.split(key, 4)

    loss_fn = VolumeLoss(pixel_loss=None, volume_loss=mse_volume_loss)

    # Lane-aligned NCHW volume: batch=2, channels=4, spatial=16x16 (2048 elems).
    preds = jax.random.normal(kp, (2, 4, 16, 16), dtype=jnp.float32)
    targets = jax.random.normal(kt, (2, 4, 16, 16), dtype=jnp.float32)
    loss = loss_fn(preds, targets)
    jax.block_until_ready(loss)
    ref = jnp.mean((preds - targets) ** 2)
    assert jnp.allclose(loss, ref, rtol=1e-5, atol=1e-5), (loss, ref)

    # Ragged row count (1280 elems -> 10 rows of 128): exercises the in-kernel
    # tail-masking path (no host-side tile padding).
    preds2 = jax.random.normal(kp2, (1, 5, 16, 16), dtype=jnp.float32)
    targets2 = jax.random.normal(kt2, (1, 5, 16, 16), dtype=jnp.float32)
    loss2 = loss_fn(preds2, targets2)
    jax.block_until_ready(loss2)
    ref2 = jnp.mean((preds2 - targets2) ** 2)
    assert jnp.allclose(loss2, ref2, rtol=1e-5, atol=1e-5), (loss2, ref2)

    print("KERNEL_OK")
</pallas_src>

<mosaic_0001>
module attributes {stable_mosaic.version = 11 : i64} {
  func.func @kernel(%arg0: i32, %arg1: i32, %arg2: memref<16x128xf32, #tpu.memory_space<vmem>>, %arg3: memref<16x128xf32, #tpu.memory_space<vmem>>, %arg4: memref<1x8x128xf32, #tpu.memory_space<vmem>>) attributes {dimension_semantics = [#tpu.dimension_semantics<arbitrary>, #tpu.dimension_semantics<arbitrary>], iteration_bounds = array<i64: 1, 1>, scalar_prefetch = 0 : i64, scratch_operands = 0 : i64, tpu.core_type = #tpu.core_type<tc>, window_params = [{transform_indices = @transform_0, window_bounds = array<i64: 16, 128>}, {transform_indices = @transform_1, window_bounds = array<i64: 16, 128>}, {transform_indices = @transform_2, window_bounds = array<i64: 1, 8, 128>}]} {
    %c0_i32 = arith.constant 0 : i32
    %0 = arith.cmpi eq, %arg1, %c0_i32 : i32
    %1 = arith.extui %0 : i1 to i32
    %c0_i32_0 = arith.constant 0 : i32
    %2 = arith.cmpi ne, %1, %c0_i32_0 : i32
    scf.if %2 {
      %cst_10 = arith.constant 0.000000e+00 : f32
      %21 = vector.broadcast %cst_10 : f32 to vector<1x8x128xf32>
      %c0_11 = arith.constant 0 : index
      %c0_12 = arith.constant 0 : index
      %c0_13 = arith.constant 0 : index
      %22 = vector.load %arg4[%c0_11, %c0_12, %c0_13] : memref<1x8x128xf32, #tpu.memory_space<vmem>>, vector<1x8x128xf32>
      tpu.vector_store %arg4[%c0_11, %c0_12, %c0_13], %21 {strides = array<i32>} : memref<1x8x128xf32, #tpu.memory_space<vmem>>, vector<1x8x128xf32>,
    } else {
    }
    %cst = arith.constant 0.000000e+00 : f32
    %3 = vector.broadcast %cst : f32 to vector<8x128xf32>
    %c0_i32_1 = arith.constant 0 : i32
    %c16_i32 = arith.constant 16 : i32
    %4 = arith.muli %c0_i32_1, %c16_i32 : i32
    %5 = tpu.assume_multiple %4, 16 : i32
    %6 = arith.index_cast %5 : i32 to index
    %c0 = arith.constant 0 : index
    %7 = vector.load %arg2[%6, %c0] : memref<16x128xf32, #tpu.memory_space<vmem>>, vector<16x128xf32>
    %8 = arith.index_cast %5 : i32 to index
    %c0_2 = arith.constant 0 : index
    %9 = vector.load %arg3[%8, %c0_2] : memref<16x128xf32, #tpu.memory_space<vmem>>, vector<16x128xf32>
    %10 = arith.subf %7, %9 : vector<16x128xf32>
    %11 = arith.mulf %10, %10 : vector<16x128xf32>
    %12 = vector.shape_cast %11 : vector<16x128xf32> to vector<2x8x128xf32>
    %cst_3 = arith.constant dense<0.000000e+00> : vector<8x128xf32>
    %13 = vector.multi_reduction <add>, %12, %cst_3 [0] : vector<2x8x128xf32> to vector<8x128xf32>
    %14 = arith.addf %3, %13 : vector<8x128xf32>
    %c1_i32 = arith.constant 1 : i32
    %c0_4 = arith.constant 0 : index
    %c0_5 = arith.constant 0 : index
    %c0_6 = arith.constant 0 : index
    %15 = vector.load %arg4[%c0_4, %c0_5, %c0_6] : memref<1x8x128xf32, #tpu.memory_space<vmem>>, vector<1x8x128xf32>
    %16 = vector.shape_cast %15 : vector<1x8x128xf32> to vector<8x128xf32>
    %17 = arith.addf %16, %14 : vector<8x128xf32>
    %c0_7 = arith.constant 0 : index
    %c0_8 = arith.constant 0 : index
    %c0_9 = arith.constant 0 : index
    %18 = vector.load %arg4[%c0_7, %c0_8, %c0_9] : memref<1x8x128xf32, #tpu.memory_space<vmem>>, vector<1x8x128xf32>
    %19 = vector.shape_cast %18 : vector<1x8x128xf32> to vector<8x128xf32>
    %20 = vector.shape_cast %17 : vector<8x128xf32> to vector<1x8x128xf32>
    tpu.vector_store %arg4[%c0_7, %c0_8, %c0_9], %20 {strides = array<i32>} : memref<1x8x128xf32, #tpu.memory_space<vmem>>, vector<1x8x128xf32>,
    return
  }
  func.func @transform_0(%arg0: i32, %arg1: i32) -> (i32, i32) {
    %c1_i32 = arith.constant 1 : i32
    %0 = arith.muli %arg0, %c1_i32 : i32
    %1 = arith.addi %0, %arg1 : i32
    %c0_i32 = arith.constant 0 : i32
    %2 = arith.minsi %1, %c0_i32 : i32
    %c0_i32_0 = arith.constant 0 : i32
    %c0_i32_1 = arith.constant 0 : i32
    return %2, %c0_i32_0 : i32, i32
  }
  func.func @transform_1(%arg0: i32, %arg1: i32) -> (i32, i32) {
    %c1_i32 = arith.constant 1 : i32
    %0 = arith.muli %arg0, %c1_i32 : i32
    %1 = arith.addi %0, %arg1 : i32
    %c0_i32 = arith.constant 0 : i32
    %2 = arith.minsi %1, %c0_i32 : i32
    %c0_i32_0 = arith.constant 0 : i32
    %c0_i32_1 = arith.constant 0 : i32
    return %2, %c0_i32_0 : i32, i32
  }
  func.func @transform_2(%arg0: i32, %arg1: i32) -> (i32, i32, i32) {
    %c0_i32 = arith.constant 0 : i32
    %c0_i32_0 = arith.constant 0 : i32
    %c0_i32_1 = arith.constant 0 : i32
    return %arg0, %c0_i32, %c0_i32_0 : i32, i32, i32
  }
}

</mosaic_0001>

<llo_original>
// kernel: tpu_custom_call.1
$region0: #{tpu_custom_call.1}
  #allocation0 [shape = 'u32[]', space=smem, size = 0x4, offset = 0x4, fixed_abs, tag = 'smem constant byte address 0x4 - core index']
  #allocation1 [shape = 'u32[144,128]{1,0:T(1,128)}', space=vmem, size = 0x12000, scoped, tag = 'internal scratch']
  %s0 = inlined_call_operand.hbm [shape: f32[16,128], index: 0, kind: input, shape index: {}]
  %s1 = inlined_call_operand.hbm [shape: f32[16,128], index: 1, kind: input, shape index: {}]
  %s2 = inlined_call_operand.hbm [shape: f32[1,8,128], index: 2, kind: output, shape index: {}]
  %s3 = sld [smem:[#allocation0]]
  $region30: #{tpu_custom_call.1} parent=0
    _
  %s5 = ssub.s32 1, %s3
  %s6 = scalar_select 0, %s5, %s3
  $region1: #{tpu_custom_call.1} parent=0
    #allocation2 [shape = 'u8[8192]{0}', space=vmem, size = 0x2000, scoped, tag = 'input window, operand 0, single buffered']
    #allocation3 [shape = 's32[1]{0}', space=sflag, size = 0x4, scoped, tag = 'scoped memory for tpu_custom_call.1']
    #allocation4 [shape = 's32[1]{0}', space=sflag, size = 0x4, scoped, tag = 'scoped memory for tpu_custom_call.1']
    #allocation5 [shape = 'u8[8192]{0}', space=vmem, size = 0x2000, scoped, tag = 'input window, operand 1, single buffered']
    #allocation6 [shape = 's32[1]{0}', space=sflag, size = 0x4, scoped, tag = 'scoped memory for tpu_custom_call.1']
    #allocation7 [shape = 'u8[4096]{0}', space=vmem, size = 0x1000, scoped, tag = 'output window, operand 0, single buffered']
    %7 = vsyncpa [#allocation3], 0
    %8 = vsyncpa [#allocation6], 0
    %9 = vsyncpa [#allocation4], 0
    // Predicated region
    $region2: #{tpu_custom_call.1} parent=1 // pred_check
      _
    $region3: #{tpu_custom_call.1} parent=1 // pred_check_branch
      %11 = sbr.rel (0) target = $region5
    $region4: #{tpu_custom_call.1} parent=1 // pred_region
      %s12 = sadd.s32 0, 0
      %p13 = scmp.lt.s32.totalorder %s12, 0
      %s14 = scalar_select %p13, %s12, 0
      %s15 = smul.u32 2, %s14
      %s17 = ssub.s32 256, 256
      %18 = vsyncadd [#allocation3], %s17
      %s19 = smul.addr %s15, 128
      %s20 = scalar_lea.hbm %s0, %s19
      %s21 = sshll.u32 [#allocation2], 4
      %s22 = int_to_ptr.vmem [resolvable:$true] %s21
      %27 = dma.hbm_to_vmem [thread:$0]  %s20, 256, %s22, [#allocation3], 128, 128, 8
    $region5: #{tpu_custom_call.1} parent=1 // pred_fallthru
      _
    // Predicated region
    $region6: #{tpu_custom_call.1} parent=1 // pred_check
      _
    $region7: #{tpu_custom_call.1} parent=1 // pred_check_branch
      %29 = sbr.rel (0) target = $region9
    $region8: #{tpu_custom_call.1} parent=1 // pred_region
      %s30 = sadd.s32 0, 0
      %p31 = scmp.lt.s32.totalorder %s30, 0
      %s32 = scalar_select %p31, %s30, 0
      %s33 = smul.u32 2, %s32
      %s35 = ssub.s32 256, 256
      %36 = vsyncadd [#allocation6], %s35
      %s37 = smul.addr %s33, 128
      %s38 = scalar_lea.hbm %s1, %s37
      %s39 = sshll.u32 [#allocation5], 4
      %s40 = int_to_ptr.vmem [resolvable:$true] %s39
      %45 = dma.hbm_to_vmem [thread:$0]  %s38, 256, %s40, [#allocation6], 128, 128, 8
    $region9: #{tpu_custom_call.1} parent=1 // pred_fallthru
      _
    // Predicated region
    $region10: #{tpu_custom_call.1} parent=1 // pred_check
      _
    $region11: #{tpu_custom_call.1} parent=1 // pred_check_branch
      %47 = sbr.rel (0) target = $region13
    $region12: #{tpu_custom_call.1} parent=1 // pred_region
      %48 = dma.done [#allocation3], 256
    $region13: #{tpu_custom_call.1} parent=1 // pred_fallthru
      _
    // Predicated region
    $region14: #{tpu_custom_call.1} parent=1 // pred_check
      _
    $region15: #{tpu_custom_call.1} parent=1 // pred_check_branch
      %50 = sbr.rel (0) target = $region17
    $region16: #{tpu_custom_call.1} parent=1 // pred_region
      %51 = dma.done [#allocation6], 256
    $region17: #{tpu_custom_call.1} parent=1 // pred_fallthru
      _
    %s52 = sadd.s32 0, 0
    %p53 = scmp.lt.s32.totalorder %s52, 0
    %s54 = scalar_select %p53, %s52, 0
    %s55 = smul.u32 2, %s54
    %s56 = sadd.s32 0, 0
    %p57 = scmp.lt.s32.totalorder %s56, 0
    %s58 = scalar_select %p57, %s56, 0
    %s59 = smul.u32 2, %s58
    %p60 = scmp.eq.s32.totalorder 0, 0
    // Predicated region
    $region18: #{tpu_custom_call.1} parent=1 // pred_check
      %p61 = pneg %p60
    $region19: #{tpu_custom_call.1} parent=1 // pred_check_branch
      %63 = sbr.rel (%p61) target = $region21
    $region20: #{tpu_custom_call.1} parent=1 // pred_region
      %64 = vst [vmem:[#allocation7] sm:$0xff] 0.0
    $region21: #{tpu_custom_call.1} parent=1 // pred_fallthru
      _
    %v65 = vld [vmem:[#allocation2] sm:$0xff]
    %v66 = vld [vmem:[#allocation2 + $0x8] sm:$0xff]
    %v67 = vld [vmem:[#allocation5] sm:$0xff]
    %v68 = vld [vmem:[#allocation5 + $0x8] sm:$0xff]
    %v69 = vsub.f32 %v65, %v67
    %v70 = vsub.f32 %v66, %v68
    %v71 = vmul.f32 %v69, %v69
    %v72 = vmul.f32 %v70, %v70
    %v73 = vadd.f32 %v71, %v72
    %v74 = vadd.f32 %v73, 0.0
    %v75 = vld [vmem:[#allocation7] sm:$0xff]
    %v76 = vadd.f32 %v75, %v74
    %77 = vst [vmem:[#allocation7] sm:$0xff] %v76
    // Predicated region
    $region22: #{tpu_custom_call.1} parent=1 // pred_check
      _
    $region23: #{tpu_custom_call.1} parent=1 // pred_check_branch
      %79 = sbr.rel (0) target = $region25
    $region24: #{tpu_custom_call.1} parent=1 // pred_region
      %s81 = ssub.s32 128, 128
      %82 = vsyncadd [#allocation4], %s81
      %s84 = sshll.u32 [#allocation7], 4
      %s85 = int_to_ptr.vmem [resolvable:$true] %s84
      %87 = dma.vmem_to_hbm [thread:$0]  %s85, 128, %s2, [#allocation4]
    $region25: #{tpu_custom_call.1} parent=1 // pred_fallthru
      _
    // Predicated region
    $region26: #{tpu_custom_call.1} parent=1 // pred_check
      _
    $region27: #{tpu_custom_call.1} parent=1 // pred_check_branch
      %89 = sbr.rel (0) target = $region29
    $region28: #{tpu_custom_call.1} parent=1 // pred_region
      %90 = dma.done [#allocation4], 128
    $region29: #{tpu_custom_call.1} parent=1 // pred_fallthru
      _
    %91 = vsyncpa [#allocation3], 1
    %92 = vsyncpa [#allocation6], 1
    %93 = vsyncpa [#allocation4], 1

</llo_original>
